<compile_context>
chip_gen: v7x
topology: tpu7x:2x2x1
jax: 0.10.0
libtpu: 0.0.40
codegen_flags: <defaults>
</compile_context>

<pallas_src>
import functools
import math

import jax
import jax.numpy as jnp
from jax.experimental import pallas as pl
from jax.experimental.pallas import tpu as pltpu

_LANE = 128
_SUBLANE = 8
_MAX_BLOCK_ROWS = 1024   # (1024, 128) f32 = 512 KiB per buffer


def _parabola_kernel(a, b, u0_ref, u1_ref, o_ref):
    """Per element: a * (1 - softmax([u0, u1])[1]) ** b, with zeros -> 1e-8."""
    u0 = u0_ref[...]
    u1 = u1_ref[...]
    # 2-class softmax, same max-subtracted form as jax.nn.softmax / torch.
    m = jnp.maximum(u0, u1)
    e0 = jnp.exp(u0 - m)
    e1 = jnp.exp(u1 - m)
    vis1 = e1 / (e0 + e1)
    rb = 1.0 - vis1
    # rb ** b via EUP exp/log. Clamp to the smallest normal so log never
    # returns -inf; exp(b * log(tiny)) underflows to 0, which the final
    # where() maps to 1e-8 -- exactly like torch.pow(0, b) -> 0 -> += 1e-8.
    safe_rb = jnp.maximum(rb, jnp.float32(1.1754944e-38))
    r = jnp.float32(a) * jnp.exp(jnp.float32(b) * jnp.log(safe_rb))
    o_ref[...] = jnp.where(r == 0.0, jnp.float32(1e-8), r)


def parabola_func_mapping(uncert, thre=0.5, up=10):
    """uncert: (..., 2) float -> R: (..., 2) float32 (both columns equal)."""
    a = float(up)
    b = math.log(1.0 / up, thre)

    orig_shape = uncert.shape
    assert orig_shape[-1] == 2, "ParabolaFuncMapping requires last dim == 2"
    u = uncert.astype(jnp.float32).reshape(-1, 2)
    n = u.shape[0]

    # Lane-dense padding: n -> rows_pad * 128, rows_pad a multiple of the
    # block row count (itself a multiple of the 8-row sublane tile).
    rows = max(1, -(-n // _LANE))
    block_rows = min(_MAX_BLOCK_ROWS, -(-rows // _SUBLANE) * _SUBLANE)
    rows_pad = -(-rows // block_rows) * block_rows
    n_pad = rows_pad * _LANE

    u0 = jnp.pad(u[:, 0], (0, n_pad - n)).reshape(rows_pad, _LANE)
    u1 = jnp.pad(u[:, 1], (0, n_pad - n)).reshape(rows_pad, _LANE)

    kernel = functools.partial(_parabola_kernel, a, b)
    out_slab = pl.pallas_call(
        kernel,
        out_shape=jax.ShapeDtypeStruct((rows_pad, _LANE), jnp.float32),
        grid_spec=pltpu.PrefetchScalarGridSpec(
            num_scalar_prefetch=0,
            grid=(rows_pad // block_rows,),
            in_specs=[
                pl.BlockSpec((block_rows, _LANE), lambda i: (i, 0)),
                pl.BlockSpec((block_rows, _LANE), lambda i: (i, 0)),
            ],
            out_specs=pl.BlockSpec((block_rows, _LANE), lambda i: (i, 0)),
        ),
        compiler_params=pltpu.CompilerParams(
            dimension_semantics=("parallel",)),
    )(u0, u1)

    vals = out_slab.reshape(-1)[:n]                       # (n,)
    # Duplicate column + reshape back to the input shape in plain XLA
    # (keeps the kernel's output lane-dense).
    return jnp.broadcast_to(vals[:, None], (n, 2)).reshape(orig_shape)


def _reference(uncert, thre=0.5, up=10):
    a = float(up)
    b = math.log(1.0 / up, thre)
    vis = jax.nn.softmax(uncert.astype(jnp.float32), axis=-1)
    rb = jnp.broadcast_to(1.0 - vis[..., 1:], vis.shape)
    r = a * jnp.power(rb, b)
    return jnp.where(r == 0.0, jnp.float32(1e-8), r)


if __name__ == "__main__":
    key = jax.random.PRNGKey(0)
    # Small shape consistent with the module: (batch=2, tracks=8, classes=2).
    uncert = jax.random.normal(key, (2, 8, 2), dtype=jnp.float32) * 3.0
    # Force one saturated row to exercise the R == 0 -> 1e-8 path.
    uncert = uncert.at[0, 0].set(jnp.array([-30.0, 30.0], dtype=jnp.float32))

    out = jax.block_until_ready(parabola_func_mapping(uncert))
    ref = _reference(uncert)

    assert out.shape == uncert.shape and out.dtype == jnp.float32
    assert jnp.allclose(out, ref, rtol=1e-4, atol=1e-7), (out, ref)

    print("KERNEL_OK")
</pallas_src>

<mosaic_0001>
module attributes {stable_mosaic.version = 11 : i64} {
  func.func @_parabola_kernel(%arg0: i32, %arg1: memref<8x128xf32, #tpu.memory_space<vmem>>, %arg2: memref<8x128xf32, #tpu.memory_space<vmem>>, %arg3: memref<8x128xf32, #tpu.memory_space<vmem>>) attributes {dimension_semantics = [#tpu.dimension_semantics<parallel>], iteration_bounds = array<i64: 1>, scalar_prefetch = 0 : i64, scratch_operands = 0 : i64, tpu.core_type = #tpu.core_type<tc>, window_params = [{transform_indices = @transform_0, window_bounds = array<i64: 8, 128>}, {transform_indices = @transform_1, window_bounds = array<i64: 8, 128>}, {transform_indices = @transform_2, window_bounds = array<i64: 8, 128>}]} {
    %c0 = arith.constant 0 : index
    %c0_0 = arith.constant 0 : index
    %0 = vector.load %arg1[%c0, %c0_0] : memref<8x128xf32, #tpu.memory_space<vmem>>, vector<8x128xf32>
    %c0_1 = arith.constant 0 : index
    %c0_2 = arith.constant 0 : index
    %1 = vector.load %arg2[%c0_1, %c0_2] : memref<8x128xf32, #tpu.memory_space<vmem>>, vector<8x128xf32>
    %2 = arith.maximumf %0, %1 : vector<8x128xf32>
    %3 = arith.subf %0, %2 : vector<8x128xf32>
    %4 = math.exp %3 : vector<8x128xf32>
    %5 = arith.subf %1, %2 : vector<8x128xf32>
    %6 = math.exp %5 : vector<8x128xf32>
    %7 = arith.addf %4, %6 : vector<8x128xf32>
    %8 = arith.divf %6, %7 : vector<8x128xf32>
    %cst = arith.constant 1.000000e+00 : f32
    %9 = vector.broadcast %cst : f32 to vector<8x128xf32>
    %10 = arith.subf %9, %8 : vector<8x128xf32>
    %cst_3 = arith.constant 1.17549435E-38 : f32
    %11 = vector.broadcast %cst_3 : f32 to vector<8x128xf32>
    %12 = arith.maximumf %10, %11 : vector<8x128xf32>
    %13 = math.log %12 : vector<8x128xf32>
    %cst_4 = arith.constant 3.32192802 : f32
    %14 = vector.broadcast %cst_4 : f32 to vector<8x128xf32>
    %15 = arith.mulf %14, %13 : vector<8x128xf32>
    %16 = math.exp %15 : vector<8x128xf32>
    %cst_5 = arith.constant 1.000000e+01 : f32
    %17 = vector.broadcast %cst_5 : f32 to vector<8x128xf32>
    %18 = arith.mulf %17, %16 : vector<8x128xf32>
    %cst_6 = arith.constant 0.000000e+00 : f32
    %19 = vector.broadcast %cst_6 : f32 to vector<8x128xf32>
    %20 = arith.cmpf oeq, %18, %19 : vector<8x128xf32>
    %cst_7 = arith.constant 9.99999993E-9 : f32
    %21 = vector.broadcast %cst_7 : f32 to vector<8x128xf32>
    %22 = arith.select %20, %21, %18 : vector<8x128xi1>, vector<8x128xf32>
    %c0_8 = arith.constant 0 : index
    %c0_9 = arith.constant 0 : index
    %23 = vector.load %arg3[%c0_8, %c0_9] : memref<8x128xf32, #tpu.memory_space<vmem>>, vector<8x128xf32>
    tpu.vector_store %arg3[%c0_8, %c0_9], %22 {strides = array<i32>} : memref<8x128xf32, #tpu.memory_space<vmem>>, vector<8x128xf32>,
    return
  }
  func.func @transform_0(%arg0: i32) -> (i32, i32) {
    %c0_i32 = arith.constant 0 : i32
    %c0_i32_0 = arith.constant 0 : i32
    return %arg0, %c0_i32 : i32, i32
  }
  func.func @transform_1(%arg0: i32) -> (i32, i32) {
    %c0_i32 = arith.constant 0 : i32
    %c0_i32_0 = arith.constant 0 : i32
    return %arg0, %c0_i32 : i32, i32
  }
  func.func @transform_2(%arg0: i32) -> (i32, i32) {
    %c0_i32 = arith.constant 0 : i32
    %c0_i32_0 = arith.constant 0 : i32
    return %arg0, %c0_i32 : i32, i32
  }
}

</mosaic_0001>

<llo_original>
// kernel: tpu_custom_call.1
$region0: #{tpu_custom_call.1}
  #allocation0 [shape = 'u32[]', space=smem, size = 0x4, offset = 0x4, fixed_abs, tag = 'smem constant byte address 0x4 - core index']
  #allocation1 [shape = 'u32[144,128]{1,0:T(1,128)}', space=vmem, size = 0x12000, scoped, tag = 'internal scratch']
  %s0 = inlined_call_operand.hbm [shape: f32[8,128], index: 0, kind: input, shape index: {}]
  %s1 = inlined_call_operand.hbm [shape: f32[8,128], index: 1, kind: input, shape index: {}]
  %s2 = inlined_call_operand.hbm [shape: f32[8,128], index: 2, kind: output, shape index: {}]
  %s3 = sld [smem:[#allocation0]]
  $region26: #{tpu_custom_call.1} parent=0
    _
  %s5 = ssub.s32 1, %s3
  %s6 = scalar_select 0, %s5, %s3
  $region1: #{tpu_custom_call.1} parent=0
    #allocation2 [shape = 'u8[4096]{0}', space=vmem, size = 0x1000, scoped, tag = 'input window, operand 0, single buffered']
    #allocation3 [shape = 's32[1]{0}', space=sflag, size = 0x4, scoped, tag = 'scoped memory for tpu_custom_call.1']
    #allocation4 [shape = 's32[1]{0}', space=sflag, size = 0x4, scoped, tag = 'scoped memory for tpu_custom_call.1']
    #allocation5 [shape = 'u8[4096]{0}', space=vmem, size = 0x1000, scoped, tag = 'input window, operand 1, single buffered']
    #allocation6 [shape = 's32[1]{0}', space=sflag, size = 0x4, scoped, tag = 'scoped memory for tpu_custom_call.1']
    #allocation7 [shape = 'u8[4096]{0}', space=vmem, size = 0x1000, scoped, tag = 'output window, operand 0, single buffered']
    %7 = vsyncpa [#allocation3], 0
    %8 = vsyncpa [#allocation6], 0
    %9 = vsyncpa [#allocation4], 0
    // Predicated region
    $region2: #{tpu_custom_call.1} parent=1 // pred_check
      _
    $region3: #{tpu_custom_call.1} parent=1 // pred_check_branch
      %11 = sbr.rel (0) target = $region5
    $region4: #{tpu_custom_call.1} parent=1 // pred_region
      %s13 = ssub.s32 128, 128
      %14 = vsyncadd [#allocation3], %s13
      %s16 = sshll.u32 [#allocation2], 4
      %s17 = int_to_ptr.vmem [resolvable:$true] %s16
      %19 = dma.hbm_to_vmem [thread:$0]  %s0, 128, %s17, [#allocation3]
    $region5: #{tpu_custom_call.1} parent=1 // pred_fallthru
      _
    // Predicated region
    $region6: #{tpu_custom_call.1} parent=1 // pred_check
      _
    $region7: #{tpu_custom_call.1} parent=1 // pred_check_branch
      %21 = sbr.rel (0) target = $region9
    $region8: #{tpu_custom_call.1} parent=1 // pred_region
      %s23 = ssub.s32 128, 128
      %24 = vsyncadd [#allocation6], %s23
      %s26 = sshll.u32 [#allocation5], 4
      %s27 = int_to_ptr.vmem [resolvable:$true] %s26
      %29 = dma.hbm_to_vmem [thread:$0]  %s1, 128, %s27, [#allocation6]
    $region9: #{tpu_custom_call.1} parent=1 // pred_fallthru
      _
    // Predicated region
    $region10: #{tpu_custom_call.1} parent=1 // pred_check
      _
    $region11: #{tpu_custom_call.1} parent=1 // pred_check_branch
      %31 = sbr.rel (0) target = $region13
    $region12: #{tpu_custom_call.1} parent=1 // pred_region
      %32 = dma.done [#allocation3], 128
    $region13: #{tpu_custom_call.1} parent=1 // pred_fallthru
      _
    // Predicated region
    $region14: #{tpu_custom_call.1} parent=1 // pred_check
      _
    $region15: #{tpu_custom_call.1} parent=1 // pred_check_branch
      %34 = sbr.rel (0) target = $region17
    $region16: #{tpu_custom_call.1} parent=1 // pred_region
      %35 = dma.done [#allocation6], 128
    $region17: #{tpu_custom_call.1} parent=1 // pred_fallthru
      _
    %v36 = vld [vmem:[#allocation2] sm:$0xff]
    %v37 = vld [vmem:[#allocation5] sm:$0xff]
    %v38 = vmax.f32 %v36, %v37
    %v39 = vsub.f32 %v36, %v38
    %v40 = vmul.f32 %v39, 1.442695
    %v41 = vpow.pop %v40
    %v42 = vsub.f32 %v37, %v38
    %v43 = vmul.f32 %v42, 1.442695
    %v44 = vpow.pop %v43
    %v45 = vadd.f32 %v41, %v44
    %v46 = vrcp.pop %v45
    %v47 = vmul.f32 %v44, %v46
    %v48 = vsub.f32 1.0, %v47
    %v49 = vmax.f32 %v48, 1.1754944e-38
    %v50 = vlog2.pop %v49
    %v51 = vmul.f32 %v50, 0.6931472
    %v52 = vmul.f32 %v51, 3.321928
    %v53 = vmul.f32 %v52, 1.442695
    %v54 = vpow.pop %v53
    %v55 = vmul.f32 %v54, 10.0
    %vm56 = vcmp.eq.f32.partialorder %v55, 0.0
    %v57 = vsel %vm56, 1e-08, %v55
    %58 = vst [vmem:[#allocation7] sm:$0xff] %v57
    // Predicated region
    $region18: #{tpu_custom_call.1} parent=1 // pred_check
      _
    $region19: #{tpu_custom_call.1} parent=1 // pred_check_branch
      %60 = sbr.rel (0) target = $region21
    $region20: #{tpu_custom_call.1} parent=1 // pred_region
      %s62 = ssub.s32 128, 128
      %63 = vsyncadd [#allocation4], %s62
      %s65 = sshll.u32 [#allocation7], 4
      %s66 = int_to_ptr.vmem [resolvable:$true] %s65
      %68 = dma.vmem_to_hbm [thread:$0]  %s66, 128, %s2, [#allocation4]
    $region21: #{tpu_custom_call.1} parent=1 // pred_fallthru
      _
    // Predicated region
    $region22: #{tpu_custom_call.1} parent=1 // pred_check
      _
    $region23: #{tpu_custom_call.1} parent=1 // pred_check_branch
      %70 = sbr.rel (0) target = $region25
    $region24: #{tpu_custom_call.1} parent=1 // pred_region
      %71 = dma.done [#allocation4], 128
    $region25: #{tpu_custom_call.1} parent=1 // pred_fallthru
      _
    %72 = vsyncpa [#allocation3], 1
    %73 = vsyncpa [#allocation6], 1
    %74 = vsyncpa [#allocation4], 1

</llo_original>
